<compile_context>
chip_gen: v7x
topology: tpu7x:2x2x1
jax: 0.10.0
libtpu: 0.0.40
codegen_flags: <defaults>
</compile_context>

<pallas_src>
import functools

import jax
import jax.numpy as jnp
from jax.experimental import pallas as pl
from jax.experimental.pallas import tpu as pltpu


def _round_up(a, m):
    return (a + m - 1) // m * m


def _tpu_budget():
    """Per-generation (default tile_n, vmem_limit_bytes)."""
    vmem = 64 * 1024 * 1024            # conservative default (v7x per-core VMEM)
    try:
        vmem = int(pltpu.get_tpu_info().vmem_capacity_bytes)
    except Exception:
        pass
    if vmem >= 100 * 1024 * 1024:      # v5e / v6e: 128 MiB VMEM
        return 1024, 100 * 1024 * 1024
    return 512, 48 * 1024 * 1024       # v7x: 64 MiB per TensorCore


def quantize_kernel(x_ref, e_ref, c_ref, q_ref, part_ref, *,
                    n_valid, n_embed, tile_n, mask_rows, mask_cols):
    x = x_ref[...]                      # (tile_n, dim)  native dtype
    e = e_ref[...]                      # (ne_p, dim)    bf16 unit-norm codebook
    c = c_ref[...]                      # (1, ne_p)      f32 lookup scales

    ne_p = e.shape[0]
    xf = x.astype(jnp.float32)

    # Search: argmax(x . e) == argmin(||x||^2 - 2 x.e + ||e||^2) since ||e||==1.
    # bf16 operands keep the MXU on its native single-pass path (f32 acc);
    # contracting dim-vs-dim so no codebook transpose is materialized.
    scores = jax.lax.dot_general(
        x.astype(jnp.bfloat16), e,
        dimension_numbers=(((1,), (1,)), ((), ())),
        preferred_element_type=jnp.float32)                     # (tile_n, ne_p)

    col_ids = jax.lax.broadcasted_iota(jnp.int32, scores.shape, 1)
    if mask_cols:
        # Padded (zero) codebook rows must never win the argmax.
        scores = jnp.where(col_ids < n_embed, scores, -jnp.inf)

    # First-index argmax (max + masked index-min): robust Mosaic lowering,
    # matches torch .max tie behavior in practice.
    max_val = jnp.max(scores, axis=1, keepdims=True)            # (tile_n, 1)
    ind = jnp.min(jnp.where(scores == max_val, col_ids, ne_p),
                  axis=1, keepdims=True)                        # (tile_n, 1)

    # Lookup: quantize_row = c[ind] * e[ind]  == max_norm=1 renormed weight row.
    # Scaled one-hot @ codebook keeps the gather on the MXU (bf16).
    sel = jnp.where(col_ids == ind, c, 0.0).astype(jnp.bfloat16)  # (tile_n, ne_p)
    quantize = jnp.dot(sel, e, preferred_element_type=jnp.float32)

    # Straight-through output: (quantize + (x + (quantize - x))) / 2.
    d = quantize - xf
    q_ref[...] = ((quantize + (xf + d)) * 0.5).astype(q_ref.dtype)

    # Per-tile partial SSE (rows of a trailing partial tile are masked out).
    if mask_rows:
        row_ids = (pl.program_id(0) * tile_n
                   + jax.lax.broadcasted_iota(jnp.int32, d.shape, 0))
        d = jnp.where(row_ids < n_valid, d, 0.0)
    sse = jnp.sum(d * d)
    part_ref[...] = jnp.broadcast_to(sse, part_ref.shape)


def quantize_forward(x, weight, *, tile_n=None):
    """x: (..., dim), weight: (n_embed, dim). Returns (quantize, diff)."""
    n_embed, dim = weight.shape
    orig_shape = x.shape
    x_flat = x.reshape(-1, dim)          # keep native dtype: no extra HBM pass
    n = x_flat.shape[0]

    default_tile, vmem_limit = _tpu_budget()
    if tile_n is None:
        tile_n = default_tile
    tile_n = max(8, min(tile_n, _round_up(n, 8)))
    num_tiles = pl.cdiv(n, tile_n)
    mask_rows = (n % tile_n) != 0

    # ---- one-time codebook prep (O(n_embed*dim), independent of N) ---------
    w = weight.astype(jnp.float32)
    norm = jnp.sqrt(jnp.sum(w * w, axis=1, keepdims=True))        # (n_embed, 1)
    e = w / norm                                                   # unit rows (search)
    # Lookup row == c * e : reproduces nn.Embedding(max_norm=1) renorm.
    c = jnp.where(norm > 1.0, norm / (norm + 1e-7), norm)          # (n_embed, 1)

    ne_p = _round_up(n_embed, 128)                                 # lane-dense scores/onehot
    mask_cols = ne_p != n_embed
    e_p = jnp.pad(e, ((0, ne_p - n_embed), (0, 0))).astype(jnp.bfloat16)   # (ne_p, dim)
    c_p = jnp.pad(jnp.transpose(c), ((0, 0), (0, ne_p - n_embed)))         # (1, ne_p) f32

    kernel = functools.partial(
        quantize_kernel, n_valid=n, n_embed=n_embed, tile_n=tile_n,
        mask_rows=mask_rows, mask_cols=mask_cols)

    itemsize = jnp.dtype(x.dtype).itemsize
    flops = 4 * n * ne_p * dim                     # score matmul + gather matmul
    bytes_accessed = (2 * n * dim * itemsize       # x in + q out
                      + ne_p * dim * 2 + ne_p * 4  # bf16 codebook + f32 scales
                      + num_tiles * 8 * 128 * 4)   # SSE partials

    q, part = pl.pallas_call(
        kernel,
        out_shape=(
            jax.ShapeDtypeStruct((n, dim), x.dtype),
            jax.ShapeDtypeStruct((8, num_tiles * 128), jnp.float32),
        ),
        grid_spec=pltpu.PrefetchScalarGridSpec(
            num_scalar_prefetch=0,
            grid=(num_tiles,),
            in_specs=[
                pl.BlockSpec((tile_n, dim), lambda i: (i, 0)),         # x tile
                pl.BlockSpec((ne_p, dim), lambda i: (0, 0),            # codebook (resident)
                             pipeline_mode=pl.Buffered(1)),
                pl.BlockSpec((1, ne_p), lambda i: (0, 0),              # lookup scales
                             pipeline_mode=pl.Buffered(1)),
            ],
            out_specs=(
                pl.BlockSpec((tile_n, dim), lambda i: (i, 0)),         # quantize tile
                pl.BlockSpec((8, 128), lambda i: (0, i)),              # per-tile SSE
            ),
        ),
        compiler_params=pltpu.CompilerParams(
            dimension_semantics=("parallel",),
            vmem_limit_bytes=vmem_limit,
        ),
        cost_estimate=pl.CostEstimate(
            flops=flops, transcendentals=0, bytes_accessed=bytes_accessed),
    )(x_flat, e_p, c_p)

    quantize = q.reshape(orig_shape)
    diff = jnp.sum(part[0, ::128]) / (n * dim)     # one sse value per tile
    return quantize, diff


def quantize_reference(x, weight):
    """Pure-JAX f32 reference mirroring the PyTorch forward."""
    dim = weight.shape[1]
    flatten = x.reshape(-1, dim).astype(jnp.float32)
    w = weight.astype(jnp.float32)
    embed = w.T / jnp.linalg.norm(w.T, axis=0, keepdims=True)
    dist = (jnp.sum(flatten ** 2, axis=1, keepdims=True)
            - 2.0 * flatten @ embed
            + jnp.sum(embed ** 2, axis=0, keepdims=True))
    ind = jnp.argmin(dist, axis=1)
    norms = jnp.linalg.norm(w, axis=1, keepdims=True)
    wc = jnp.where(norms > 1.0, w / (norms + 1e-7), w)
    quantize = wc[ind].reshape(x.shape)
    diff = jnp.mean((quantize - x) ** 2)
    quantize_1 = x + (quantize - x)
    return (quantize + quantize_1) / 2, diff


if __name__ == "__main__":
    dim, n_embed = 32, 64
    batch, seq = 2, 8

    key = jax.random.PRNGKey(0)
    kx, kw = jax.random.split(key)
    x = jax.random.normal(kx, (batch, seq, dim), dtype=jnp.float32)
    # nn.Embedding default init: weight ~ N(0, 1), shape (n_embed, dim)
    weight = jax.random.normal(kw, (n_embed, dim), dtype=jnp.float32)

    q, diff = quantize_forward(x, weight)
    jax.block_until_ready((q, diff))

    # ---- validation --------------------------------------------------------
    # The kernel searches/looks up with a bf16 codebook (per perf guidance), so
    # exact f32 index ties may legally resolve differently.  Validate robustly:
    #   (1) every output row is (to bf16 accuracy) a valid max_norm=1 code,
    #   (2) the selected code is within a small margin of the true optimum,
    #   (3) the scalar loss matches the f32 reference to bf16-level accuracy.
    q_ref, diff_ref = quantize_reference(x, weight)

    flat_x = x.reshape(-1, dim)
    flat_q = q.reshape(-1, dim).astype(jnp.float32)
    norms = jnp.linalg.norm(weight, axis=1, keepdims=True)
    wc = jnp.where(norms > 1.0, weight / (norms + 1e-7), weight)   # lookup table
    e_unit = weight / norms                                        # search table
    dist = (jnp.sum(flat_x ** 2, axis=1, keepdims=True)
            - 2.0 * flat_x @ e_unit.T + 1.0)                       # f32 distances

    ind_k = jnp.argmin(
        jnp.sum((flat_q[:, None, :] - wc[None, :, :]) ** 2, axis=-1), axis=1)
    rows = jnp.arange(flat_x.shape[0])

    assert q.shape == q_ref.shape and q.dtype == x.dtype
    assert jnp.allclose(flat_q, wc[ind_k], atol=2e-2), \
        "output rows are not (renormed) codebook entries"
    assert bool(jnp.all(dist[rows, ind_k] <= jnp.min(dist, axis=1) + 1e-1)), \
        "selected code is not (near-)optimal"
    assert jnp.allclose(diff, diff_ref, atol=3e-2, rtol=3e-2), \
        "diff mismatch vs reference"

    print("KERNEL_OK")
</pallas_src>

<mosaic_0001>
module attributes {stable_mosaic.version = 11 : i64} {
  func.func @quantize_kernel(%arg0: i32, %arg1: memref<16x32xf32, #tpu.memory_space<vmem>>, %arg2: memref<128x32xbf16, #tpu.memory_space<vmem>>, %arg3: memref<1x128xf32, #tpu.memory_space<vmem>>, %arg4: memref<16x32xf32, #tpu.memory_space<vmem>>, %arg5: memref<8x128xf32, #tpu.memory_space<vmem>>) attributes {dimension_semantics = [#tpu.dimension_semantics<parallel>], iteration_bounds = array<i64: 1>, scalar_prefetch = 0 : i64, scratch_operands = 0 : i64, tpu.core_type = #tpu.core_type<tc>, window_params = [{transform_indices = @transform_0, window_bounds = array<i64: 16, 32>}, {pipeline_mode = #tpu.pipeline_mode<synchronous>, transform_indices = @transform_1, window_bounds = array<i64: 128, 32>}, {pipeline_mode = #tpu.pipeline_mode<synchronous>, transform_indices = @transform_2, window_bounds = array<i64: 1, 128>}, {transform_indices = @transform_3, window_bounds = array<i64: 16, 32>}, {transform_indices = @transform_4, window_bounds = array<i64: 8, 128>}]} {
    %c0 = arith.constant 0 : index
    %c0_0 = arith.constant 0 : index
    %0 = vector.load %arg1[%c0, %c0_0] : memref<16x32xf32, #tpu.memory_space<vmem>>, vector<16x32xf32>
    %c0_1 = arith.constant 0 : index
    %c0_2 = arith.constant 0 : index
    %1 = vector.load %arg2[%c0_1, %c0_2] : memref<128x32xbf16, #tpu.memory_space<vmem>>, vector<128x32xbf16>
    %c0_3 = arith.constant 0 : index
    %c0_4 = arith.constant 0 : index
    %2 = vector.load %arg3[%c0_3, %c0_4] : memref<1x128xf32, #tpu.memory_space<vmem>>, vector<1x128xf32>
    %3 = arith.truncf %0 : vector<16x32xf32> to vector<16x32xbf16>
    %cst = arith.constant dense<0.000000e+00> : vector<16x128xf32>
    %4 = tpu.matmul %3, %1, %cst {dimension_numbers = #tpu.dot_dimension_numbers<[1], [1], [0], [0], [0, 0, 1, 0], [], []>} : vector<16x32xbf16>, vector<128x32xbf16>, vector<16x128xf32> -> vector<16x128xf32>
    %5 = tpu.iota {dimensions = array<i32: 1>} : vector<16x128xi32>
    %c64_i32 = arith.constant 64 : i32
    %6 = vector.broadcast %c64_i32 : i32 to vector<16x128xi32>
    %7 = arith.cmpi slt, %5, %6 : vector<16x128xi32>
    %cst_5 = arith.constant 0xFF800000 : f32
    %8 = vector.broadcast %cst_5 : f32 to vector<16x128xf32>
    %9 = arith.select %7, %4, %8 : vector<16x128xi1>, vector<16x128xf32>
    %cst_6 = arith.constant dense<0xFF800000> : vector<16xf32>
    %10 = vector.multi_reduction <maximumf>, %9, %cst_6 [1] : vector<16x128xf32> to vector<16xf32>
    %11 = vector.shape_cast %10 : vector<16xf32> to vector<16x1xf32>
    %12 = vector.broadcast %11 : vector<16x1xf32> to vector<16x128xf32>
    %13 = arith.cmpf oeq, %9, %12 : vector<16x128xf32>
    %c128_i32 = arith.constant 128 : i32
    %14 = vector.broadcast %c128_i32 : i32 to vector<16x128xi32>
    %15 = arith.select %13, %5, %14 : vector<16x128xi1>, vector<16x128xi32>
    %cst_7 = arith.constant dense<2147483647> : vector<16xi32>
    %16 = vector.multi_reduction <minsi>, %15, %cst_7 [1] : vector<16x128xi32> to vector<16xi32>
    %17 = vector.shape_cast %16 : vector<16xi32> to vector<16x1xi32>
    %18 = vector.broadcast %17 : vector<16x1xi32> to vector<16x128xi32>
    %19 = arith.cmpi eq, %5, %18 : vector<16x128xi32>
    %cst_8 = arith.constant 0.000000e+00 : f32
    %20 = vector.shape_cast %2 : vector<1x128xf32> to vector<1x128xf32>
    %21 = vector.broadcast %20 : vector<1x128xf32> to vector<16x128xf32>
    %22 = vector.broadcast %cst_8 : f32 to vector<16x128xf32>
    %23 = arith.select %19, %21, %22 : vector<16x128xi1>, vector<16x128xf32>
    %24 = arith.truncf %23 : vector<16x128xf32> to vector<16x128xbf16>
    %cst_9 = arith.constant dense<0.000000e+00> : vector<16x32xf32>
    %25 = tpu.matmul %24, %1, %cst_9 {dimension_numbers = #tpu.dot_dimension_numbers<[1], [0], [0], [1], [0, 0, 1, 1], [], []>} : vector<16x128xbf16>, vector<128x32xbf16>, vector<16x32xf32> -> vector<16x32xf32>
    %26 = arith.subf %25, %0 : vector<16x32xf32>
    %27 = arith.addf %0, %26 : vector<16x32xf32>
    %28 = arith.addf %25, %27 : vector<16x32xf32>
    %cst_10 = arith.constant 5.000000e-01 : f32
    %29 = vector.broadcast %cst_10 : f32 to vector<16x32xf32>
    %30 = arith.mulf %28, %29 : vector<16x32xf32>
    %c0_11 = arith.constant 0 : index
    %c0_12 = arith.constant 0 : index
    %31 = vector.load %arg4[%c0_11, %c0_12] : memref<16x32xf32, #tpu.memory_space<vmem>>, vector<16x32xf32>
    tpu.vector_store %arg4[%c0_11, %c0_12], %30 {strides = array<i32>} : memref<16x32xf32, #tpu.memory_space<vmem>>, vector<16x32xf32>,
    %32 = arith.mulf %26, %26 : vector<16x32xf32>
    %33 = vector.shape_cast %32 : vector<16x32xf32> to vector<1x16x32xf32>
    %cst_13 = arith.constant dense<0.000000e+00> : vector<1xf32>
    %34 = vector.multi_reduction <add>, %33, %cst_13 [1, 2] : vector<1x16x32xf32> to vector<1xf32>
    %35 = vector.shape_cast %34 : vector<1xf32> to vector<1x1x1xf32>
    %36 = vector.extract %35[0, 0, 0] : f32 from vector<1x1x1xf32>
    %37 = vector.broadcast %36 : f32 to vector<8x128xf32>
    %c0_14 = arith.constant 0 : index
    %c0_15 = arith.constant 0 : index
    %38 = vector.load %arg5[%c0_14, %c0_15] : memref<8x128xf32, #tpu.memory_space<vmem>>, vector<8x128xf32>
    tpu.vector_store %arg5[%c0_14, %c0_15], %37 {strides = array<i32>} : memref<8x128xf32, #tpu.memory_space<vmem>>, vector<8x128xf32>,
    return
  }
  func.func @transform_0(%arg0: i32) -> (i32, i32) {
    %c0_i32 = arith.constant 0 : i32
    %c0_i32_0 = arith.constant 0 : i32
    return %arg0, %c0_i32 : i32, i32
  }
  func.func @transform_1(%arg0: i32) -> (i32, i32) {
    %c0_i32 = arith.constant 0 : i32
    %c0_i32_0 = arith.constant 0 : i32
    %c0_i32_1 = arith.constant 0 : i32
    return %c0_i32, %c0_i32_0 : i32, i32
  }
  func.func @transform_2(%arg0: i32) -> (i32, i32) {
    %c0_i32 = arith.constant 0 : i32
    %c0_i32_0 = arith.constant 0 : i32
    %c0_i32_1 = arith.constant 0 : i32
    return %c0_i32, %c0_i32_0 : i32, i32
  }
  func.func @transform_3(%arg0: i32) -> (i32, i32) {
    %c0_i32 = arith.constant 0 : i32
    %c0_i32_0 = arith.constant 0 : i32
    return %arg0, %c0_i32 : i32, i32
  }
  func.func @transform_4(%arg0: i32) -> (i32, i32) {
    %c0_i32 = arith.constant 0 : i32
    %c0_i32_0 = arith.constant 0 : i32
    return %c0_i32, %arg0 : i32, i32
  }
}

</mosaic_0001>

<llo_original>
// kernel: tpu_custom_call.1
$region0: #{tpu_custom_call.1}
  #allocation0 [shape = 'u32[]', space=smem, size = 0x4, offset = 0x4, fixed_abs, tag = 'smem constant byte address 0x4 - core index']
  #allocation1 [shape = 'u32[144,128]{1,0:T(1,128)}', space=vmem, size = 0x12000, scoped, tag = 'internal scratch']
  %s0 = inlined_call_operand.vmem [shape: f32[16,32], index: 0, kind: input, shape index: {}]
  %s1 = inlined_call_operand.vmem [shape: bf16[128,32], index: 1, kind: input, shape index: {}]
  %s2 = inlined_call_operand.vmem [shape: f32[1,128], index: 2, kind: input, shape index: {}]
  %s3 = inlined_call_operand.hbm [shape: f32[16,32], index: 3, kind: output, shape index: {0}]
  %s4 = inlined_call_operand.hbm [shape: f32[8,128], index: 4, kind: output, shape index: {1}]
  %5 = xla_tuple %s3, %s4
  %s6 = sld [smem:[#allocation0]]
  $region30: #{tpu_custom_call.1} parent=0
    _
  %s8 = ssub.s32 1, %s6
  %s9 = scalar_select 0, %s8, %s6
  $region1: #{tpu_custom_call.1} parent=0
    #allocation2 [shape = 'u8[8192]{0}', space=vmem, size = 0x2000, scoped, tag = 'output window, operand 0, single buffered']
    #allocation3 [shape = 's32[1]{0}', space=sflag, size = 0x4, scoped, tag = 'scoped memory for tpu_custom_call.1']
    #allocation4 [shape = 'u8[4096]{0}', space=vmem, size = 0x1000, scoped, tag = 'output window, operand 1, single buffered']
    #allocation5 [shape = 's32[1]{0}', space=sflag, size = 0x4, scoped, tag = 'scoped memory for tpu_custom_call.1']
    %10 = vsyncpa [#allocation3], 0
    %11 = vsyncpa [#allocation5], 0
    // Predicated region
    $region2: #{tpu_custom_call.1} parent=1 // pred_check
      _
    $region3: #{tpu_custom_call.1} parent=1 // pred_check_branch
      %13 = sbr.rel (0) target = $region5
    $region4: #{tpu_custom_call.1} parent=1 // pred_region
      _
    $region5: #{tpu_custom_call.1} parent=1 // pred_fallthru
      _
    // Predicated region
    $region6: #{tpu_custom_call.1} parent=1 // pred_check
      _
    $region7: #{tpu_custom_call.1} parent=1 // pred_check_branch
      %15 = sbr.rel (0) target = $region9
    $region8: #{tpu_custom_call.1} parent=1 // pred_region
      _
    $region9: #{tpu_custom_call.1} parent=1 // pred_fallthru
      _
    // Predicated region
    $region10: #{tpu_custom_call.1} parent=1 // pred_check
      _
    $region11: #{tpu_custom_call.1} parent=1 // pred_check_branch
      %17 = sbr.rel (0) target = $region13
    $region12: #{tpu_custom_call.1} parent=1 // pred_region
      _
    $region13: #{tpu_custom_call.1} parent=1 // pred_fallthru
      _
    %v19 = vld [vmem:[%s0] sm:$0xff]
    %v20 = vld [vmem:[%s0 + $0x8] sm:$0xff]
    %v21 = vld [vmem:[%s1] sm:$0xf]
    %v22 = vld [vmem:[%s1 + $0x4] sm:$0xf]
    %v23 = vld [vmem:[%s1 + $0x8] sm:$0xf]
    %v24 = vld [vmem:[%s1 + $0xc] sm:$0xf]
    %v25 = vld [vmem:[%s1 + $0x10] sm:$0xf]
    %v26 = vld [vmem:[%s1 + $0x14] sm:$0xf]
    %v27 = vld [vmem:[%s1 + $0x18] sm:$0xf]
    %v28 = vld [vmem:[%s1 + $0x1c] sm:$0xf]
    %v29 = vld [vmem:[%s1 + $0x20] sm:$0xf]
    %v30 = vld [vmem:[%s1 + $0x24] sm:$0xf]
    %v31 = vld [vmem:[%s1 + $0x28] sm:$0xf]
    %v32 = vld [vmem:[%s1 + $0x2c] sm:$0xf]
    %v33 = vld [vmem:[%s1 + $0x30] sm:$0xf]
    %v34 = vld [vmem:[%s1 + $0x34] sm:$0xf]
    %v35 = vld [vmem:[%s1 + $0x38] sm:$0xf]
    %v36 = vld [vmem:[%s1 + $0x3c] sm:$0xf]
    %v37 = vld [vmem:[%s2] sm:$0x1]
    %v38 = vpack.c.bf16 %v20, %v19
    %v55 = vunpack.c.l.b16 %v21
    %v56 = vunpack.c.l.b16 %v22
    %v57 = vunpack.c.l.b16 %v23
    %v58 = vunpack.c.l.b16 %v24
    %v59 = vunpack.c.l.b16 %v25
    %v60 = vunpack.c.l.b16 %v26
    %v61 = vunpack.c.l.b16 %v27
    %v62 = vunpack.c.l.b16 %v28
    %v63 = vunpack.c.l.b16 %v29
    %v64 = vunpack.c.l.b16 %v30
    %v65 = vunpack.c.l.b16 %v31
    %v66 = vunpack.c.l.b16 %v32
    %v67 = vunpack.c.l.b16 %v33
    %v68 = vunpack.c.l.b16 %v34
    %v69 = vunpack.c.l.b16 %v35
    %v70 = vunpack.c.l.b16 %v36
    %v71 = vpack.c.b16 %v56, %v55
    %v72 = vpack.c.b16 %v58, %v57
    %v73 = vpack.c.b16 %v60, %v59
    %v74 = vpack.c.b16 %v62, %v61
    %v75 = vpack.c.b16 %v64, %v63
    %v76 = vpack.c.b16 %v66, %v65
    %v77 = vpack.c.b16 %v68, %v67
    %v78 = vpack.c.b16 %v70, %v69
    %vm79 = vcmask 261120
    %v81 = vsel %vm79, %v38, 0
    %v84 = vsel %vm79, %v71, 0
    %v87 = vsel %vm79, %v72, 0
    %v90 = vsel %vm79, %v73, 0
    %v93 = vsel %vm79, %v74, 0
    %v96 = vsel %vm79, %v75, 0
    %v99 = vsel %vm79, %v76, 0
    %v102 = vsel %vm79, %v77, 0
    %v105 = vsel %vm79, %v78, 0
    %107 = vmatprep.subr.bf16.mxu0 0
    %108 = vmatpush1.bf16.xpose.msra.mxu0 %v84
    %109 = vmatprep.subr.bf16.mxu0 0
    %110 = vmatpush1.bf16.xpose.msra.mxu0 %v87
    %111 = vmatprep.subr.bf16.mxu0 0
    %112 = vmatpush1.bf16.xpose.msra.mxu0 %v90
    %113 = vmatprep.subr.bf16.mxu0 0
    %114 = vmatpush1.bf16.xpose.msra.mxu0 %v93
    %115 = vmatprep.subr.bf16.mxu0 0
    %116 = vmatpush1.bf16.xpose.msra.mxu0 %v96
    %117 = vmatprep.subr.bf16.mxu0 0
    %118 = vmatpush1.bf16.xpose.msra.mxu0 %v99
    %119 = vmatprep.subr.bf16.mxu0 0
    %120 = vmatpush1.bf16.xpose.msra.mxu0 %v102
    %121 = vmatprep.subr.bf16.mxu0 0
    %122 = vmatpush1.bf16.xpose.msra.mxu0 %v105
    %123 = vmatprep.subr.bf16.mxu0 0
    %124 = vmatpush1.bf16.xpose.msra.mxu0 0
    %125 = vmatprep.subr.bf16.mxu0 0
    %126 = vmatpush1.bf16.xpose.msra.mxu0 0
    %127 = vmatprep.subr.bf16.mxu0 0
    %128 = vmatpush1.bf16.xpose.msra.mxu0 0
    %129 = vmatprep.subr.bf16.mxu0 0
    %130 = vmatpush1.bf16.xpose.msra.mxu0 0
    %131 = vmatprep.subr.bf16.mxu0 0
    %132 = vmatpush1.bf16.xpose.msra.mxu0 0
    %133 = vmatprep.subr.bf16.mxu0 0
    %134 = vmatpush1.bf16.xpose.msra.mxu0 0
    %135 = vmatprep.subr.bf16.mxu0 0
    %136 = vmatpush1.bf16.xpose.msra.mxu0 0
    %137 = vmatprep.subr.bf16.mxu0 0
    %138 = vmatpush1.bf16.xpose.msra.mxu0 0
    %139 = vmatprep.mubr.bf16.mxu0 0
    %140 = vmatmul.mubr.bf16.gmra.mrb[0].mxu0 %v81
    %v141 = vpop.f32.mrb[0].mxu0
    %v142 = vadd.f32 0.0, %v141
    %v143 = vpop.f32.mrb[0].mxu0
    %v144 = vpop.f32.mrb[0].mxu0
    %v145 = vadd.f32 0.0, %v144
    %v146 = vpop.f32.mrb[0].mxu0
    %147 = vdwg.mxu0
    %v148 = vlaneseq
    %v149 = vand.u32 %v148, 127
    %vm150 = vcmp.lt.s32.totalorder %v149, 64
    %v151 = vsel %vm150, %v142, -inf
    %v152 = vsel %vm150, %v145, -inf
    %153 = vmax.xlane.f32.xlu0 %v151
    %v154 = vpop.xlane.xlu0 %153
    %155 = vmax.xlane.f32.xlu0 %v152
    %v156 = vpop.xlane.xlu0 %155
    %vm157 = vcmp.eq.f32.partialorder %v151, %v154
    %vm158 = vcmp.eq.f32.partialorder %v152, %v156
    %v159 = vsel %vm157, %v149, 128
    %v160 = vsel %vm158, %v149, 128
    %v161 = vand.u32 %v159, 65535
    %v162 = vshra.s32 %v159, 16
    %v163 = vcvt.s32.f32 %v161
    %v164 = vcvt.s32.f32 %v162
    %165 = vmin.xlane.f32.xlu0 %v164
    %v166 = vpop.xlane.xlu0 %165
    %vm167 = vcmp.eq.f32.partialorder %v164, %v166
    %v168 = vsel %vm167, %v163, inf
    %169 = vmin.xlane.f32.xlu0 %v168
    %v170 = vpop.xlane.xlu0 %169
    %v171 = vcvt.f32.s32 %v170
    %v172 = vcvt.f32.s32 %v166
    %v173 = vshll.u32 %v172, 16
    %v174 = vadd.s32 %v173, %v171
    %v175 = vand.u32 %v160, 65535
    %v176 = vshra.s32 %v160, 16
    %v177 = vcvt.s32.f32 %v175
    %v178 = vcvt.s32.f32 %v176
    %179 = vmin.xlane.f32.xlu0 %v178
    %v180 = vpop.xlane.xlu0 %179
    %vm181 = vcmp.eq.f32.partialorder %v178, %v180
    %v182 = vsel %vm181, %v177, inf
    %183 = vmin.xlane.f32.xlu0 %v182
    %v184 = vpop.xlane.xlu0 %183
    %v185 = vcvt.f32.s32 %v184
    %v186 = vcvt.f32.s32 %v180
    %v187 = vshll.u32 %v186, 16
    %v188 = vadd.s32 %v187, %v185
    %vm189 = vcmp.eq.s32.totalorder %v149, %v174
    %vm190 = vcmp.eq.s32.totalorder %v149, %v188
    %v192 = vlaneseq
    %v193 = vshrl.u32 %v192, 7
    %v194 = vsub.s32 0, %v193
    %v195 = vrot.slane %v37, %v194
    %v197 = vsel %vm189, %v195, 0.0
    %v198 = vsel %vm190, %v195, 0.0
    %v199 = vpack.c.bf16 %v198, %v197
    %208 = vmatprep.subr.bf16.mxu0 0
    %209 = vmatpush1.bf16.msra.mxu0 %v71
    %210 = vmatprep.subr.bf16.mxu0 0
    %211 = vmatpush1.bf16.msra.mxu0 %v72
    %212 = vmatprep.subr.bf16.mxu0 0
    %213 = vmatpush1.bf16.msra.mxu0 %v73
    %214 = vmatprep.subr.bf16.mxu0 0
    %215 = vmatpush1.bf16.msra.mxu0 %v74
    %216 = vmatprep.subr.bf16.mxu0 0
    %217 = vmatpush1.bf16.msra.mxu0 %v75
    %218 = vmatprep.subr.bf16.mxu0 0
    %219 = vmatpush1.bf16.msra.mxu0 %v76
    %220 = vmatprep.subr.bf16.mxu0 0
    %221 = vmatpush1.bf16.msra.mxu0 %v77
    %222 = vmatprep.subr.bf16.mxu0 0
    %223 = vmatpush1.bf16.msra.mxu0 %v78
    %224 = vmatprep.subr.bf16.mxu0 0
    %225 = vmatpush1.bf16.msra.mxu0 0
    %226 = vmatprep.subr.bf16.mxu0 0
    %227 = vmatpush1.bf16.msra.mxu0 0
    %228 = vmatprep.subr.bf16.mxu0 0
    %229 = vmatpush1.bf16.msra.mxu0 0
    %230 = vmatprep.subr.bf16.mxu0 0
    %231 = vmatpush1.bf16.msra.mxu0 0
    %232 = vmatprep.subr.bf16.mxu0 0
    %233 = vmatpush1.bf16.msra.mxu0 0
    %234 = vmatprep.subr.bf16.mxu0 0
    %235 = vmatpush1.bf16.msra.mxu0 0
    %236 = vmatprep.subr.bf16.mxu0 0
    %237 = vmatpush1.bf16.msra.mxu0 0
    %238 = vmatprep.subr.bf16.mxu0 0
    %239 = vmatpush1.bf16.msra.mxu0 0
    %240 = vmatprep.mubr.bf16.mxu0 0
    %241 = vmatmul.mubr.bf16.gmra.mrb[0].mxu0 %v199
    %v242 = vpop.f32.mrb[0].mxu0
    %v243 = vadd.f32 0.0, %v242
    %v244 = vpop.f32.mrb[0].mxu0
    %v245 = vpop.f32.mrb[0].mxu0
    %v246 = vadd.f32 0.0, %v245
    %v247 = vpop.f32.mrb[0].mxu0
    %248 = vdwg.mxu0
    %v249 = vsub.f32 %v243, %v19
    %v250 = vsub.f32 %v246, %v20
    %v251 = vadd.f32 %v19, %v249
    %v252 = vadd.f32 %v20, %v250
    %v253 = vadd.f32 %v243, %v251
    %v254 = vadd.f32 %v246, %v252
    %v255 = vmul.f32 %v253, 0.5
    %v256 = vmul.f32 %v254, 0.5
    %257 = vst.msk [vmem:[#allocation2] sm:$0xff] %vm79, %v255
    %258 = vst.msk [vmem:[#allocation2 + $0x8] sm:$0xff] %vm79, %v256
    %v259 = vmul.f32 %v249, %v249
    %v260 = vmul.f32 %v250, %v250
    %v261 = vsel %vm79, %v259, 0.0
    %v262 = vsel %vm79, %v260, 0.0
    %v263 = vadd.f32 %v261, %v262
    %264 = vadd.xlane.f32.xlu0 %v263
    %v265 = vpop.xlane.xlu0 %264
    %v266 = vrot.slane %v265, 4
    %v267 = vadd.f32 %v265, %v266
    %v268 = vrot.slane %v267, 2
    %v269 = vadd.f32 %v267, %v268
    %v270 = vrot.slane %v269, 1
    %v271 = vadd.f32 %v269, %v270
    %s272 = vtos %v271
    %v273 = vstv %s272
    %274 = vst [vmem:[#allocation4] sm:$0xff] %v273
    // Predicated region
    $region14: #{tpu_custom_call.1} parent=1 // pred_check
      _
    $region15: #{tpu_custom_call.1} parent=1 // pred_check_branch
      %276 = sbr.rel (0) target = $region17
    $region16: #{tpu_custom_call.1} parent=1 // pred_region
      %s278 = ssub.s32 256, 256
      %279 = vsyncadd [#allocation3], %s278
      %s280 = sshll.u32 [#allocation2], 4
      %s281 = int_to_ptr.vmem [resolvable:$true] %s280
      %286 = dma.vmem_to_hbm [thread:$0]  %s281, 256, %s3, [#allocation3], 128, 128, 8
    $region17: #{tpu_custom_call.1} parent=1 // pred_fallthru
      _
    // Predicated region
    $region18: #{tpu_custom_call.1} parent=1 // pred_check
      _
    $region19: #{tpu_custom_call.1} parent=1 // pred_check_branch
      %288 = sbr.rel (0) target = $region21
    $region20: #{tpu_custom_call.1} parent=1 // pred_region
      %s290 = ssub.s32 128, 128
      %291 = vsyncadd [#allocation5], %s290
      %s293 = sshll.u32 [#allocation4], 4
      %s294 = int_to_ptr.vmem [resolvable:$true] %s293
      %296 = dma.vmem_to_hbm [thread:$0]  %s294, 128, %s4, [#allocation5]
    $region21: #{tpu_custom_call.1} parent=1 // pred_fallthru
      _
    // Predicated region
    $region22: #{tpu_custom_call.1} parent=1 // pred_check
      _
    $region23: #{tpu_custom_call.1} parent=1 // pred_check_branch
      %298 = sbr.rel (0) target = $region25
    $region24: #{tpu_custom_call.1} parent=1 // pred_region
      %299 = dma.done [#allocation3], 256
    $region25: #{tpu_custom_call.1} parent=1 // pred_fallthru
      _
    // Predicated region
    $region26: #{tpu_custom_call.1} parent=1 // pred_check
      _
    $region27: #{tpu_custom_call.1} parent=1 // pred_check_branch
      %301 = sbr.rel (0) target = $region29
    $region28: #{tpu_custom_call.1} parent=1 // pred_region
      %302 = dma.done [#allocation5], 128
    $region29: #{tpu_custom_call.1} parent=1 // pred_fallthru
      _
    %303 = vsyncpa [#allocation3], 1
    %304 = vsyncpa [#allocation5], 1

</llo_original>
